<compile_context>
chip_gen: v6e
topology: v6e:2x2x1
jax: 0.10.0
libtpu: 0.0.40
codegen_flags: <defaults>
</compile_context>

<pallas_src>
import functools
import math

import jax
import jax.numpy as jnp
from jax import lax
from jax.experimental import pallas as pl
from jax.experimental.pallas import tpu as pltpu

LANE = 128
_VMEM_BUDGET = 40 * 1024 * 1024      # target working set (headroom under v7x 64 MiB)
_VMEM_LIMIT_CAP = 56 * 1024 * 1024   # never request more than this from the compiler


def _round_up(x, m):
    return (x + m - 1) // m * m


def _cdiv(a, b):
    return -(-a // b)


def _split_pad_gates(a, g, gp):
    """Map a (..., 2*g) gated tensor to (..., 2*gp): tanh half -> cols [0:gp],
    sigmoid half -> cols [gp:2*gp] (padded columns zero).  Identity when g == gp."""
    if g == gp:
        return a
    padc = [(0, 0)] * (a.ndim - 1) + [(0, gp - g)]
    t = jnp.pad(a[..., :g], padc)
    s = jnp.pad(a[..., g:], padc)
    return jnp.concatenate([t, s], axis=-1)


def _estimate_vmem_bytes(tt, Cp, Gp, Sp, dil, has_h, has_res, item):
    """Rough VMEM footprint: double-buffered I/O tiles + weights + f32 temporaries."""
    per_step = tt * Cp + dil * Cp + tt * Sp
    if has_res:
        per_step += tt * Cp
    if has_h:
        per_step += tt * 2 * Gp
    weights = 2 * (Cp * 2 * Gp) + 2 * Gp + Gp * Sp + Sp
    if has_res:
        weights += Gp * Cp + Cp
    dbl = 2 * (per_step + weights) * item
    f32_tmp = tt * (2 * Gp + 2 * Gp + Gp + 2 * Cp + Sp) * 4
    return dbl + f32_tmp


# ----------------------------------------------------------------------------
# Pallas kernel: dilated causal conv taps -> gating -> residual & skip 1x1 convs
# ----------------------------------------------------------------------------
def _wavenet_block_kernel(*refs, gate_p, has_h, has_res):
    it = iter(refs)
    x_ref = next(it)           # (tt, Cp)  current-sample tap (k = 1)
    halo_ref = next(it)        # (dil, Cp) rows immediately preceding the tile
    h_ref = next(it) if has_h else None
    w1_ref = next(it)          # (Cp, 2Gp) weights for tap k=1 (sample t)
    w0_ref = next(it)          # (Cp, 2Gp) weights for tap k=0 (sample t - dilation)
    bd_ref = next(it)          # (1, 2Gp)  f32
    if has_res:
        wres_ref = next(it)    # (Gp, Cp)
        bres_ref = next(it)    # (1, Cp) f32
    wskip_ref = next(it)       # (Gp, Sp)
    bskip_ref = next(it)       # (1, Sp) f32
    if has_res:
        res_out_ref = next(it)
    skip_out_ref = next(it)

    x_cur = x_ref[...]
    tt = x_cur.shape[0]

    # Rebuild the dilation-shifted tap in VMEM: rows [t - dil] come from the halo for
    # the first `dil` rows of the tile and from the tile itself afterwards.
    halo_f32 = halo_ref[...].astype(jnp.float32)
    if halo_f32.shape[0] >= tt:
        tap0 = halo_f32[:tt]
    else:
        tap0 = jnp.concatenate([halo_f32, x_cur.astype(jnp.float32)], axis=0)[:tt]

    od = (jnp.dot(x_cur, w1_ref[...], preferred_element_type=jnp.float32)
          + jnp.dot(tap0.astype(w0_ref.dtype), w0_ref[...],
                    preferred_element_type=jnp.float32)
          + bd_ref[...])
    if has_h:
        od = od + h_ref[...].astype(jnp.float32)

    # Gated activation in f32 (v5e-safe).  Padded gate columns have zero tanh-input
    # (zero weight cols + zero bias + zero h padding) so `gated`'s padded lanes are
    # exactly zero; the matching 1x1-conv weight rows are zero too.  Do not rely on
    # those lanes elsewhere.
    t = od[:, :gate_p]
    s = od[:, gate_p:]
    gated = (jnp.tanh(t) * jax.nn.sigmoid(s)).astype(wskip_ref.dtype)

    skip = (jnp.dot(gated, wskip_ref[...], preferred_element_type=jnp.float32)
            + bskip_ref[...])
    skip_out_ref[...] = skip.astype(skip_out_ref.dtype)
    if has_res:
        res = (jnp.dot(gated, wres_ref[...], preferred_element_type=jnp.float32)
               + bres_ref[...] + x_cur.astype(jnp.float32))
        res_out_ref[...] = res.astype(res_out_ref.dtype)


# ----------------------------------------------------------------------------
# Time-major (B, T, C) entry point.  In a stacked WaveNet model pass
# return_padded=True and keep the lane/time padded layouts alive between blocks so
# the per-block pad / slice / transpose HBM passes disappear.
# ----------------------------------------------------------------------------
def wavenet_block_apply_btc(x_btc, params, h_btc=None, *, dilation=1, kernel_size=2,
                            return_residual=True, tm=1024, io_dtype=None,
                            return_padded=False):
    assert kernel_size == 2, "implemented for kernel_size=2 (WaveNet default)"
    # TODO(synk): generalize to arbitrary kernel_size by adding one halo tap per extra tap.

    B, T, C_in = x_btc.shape
    G = params["w_skip"].shape[1]          # gate_channels
    S = params["w_skip"].shape[0]          # skip_channels
    dil = int(dilation)
    out_dtype = x_btc.dtype
    dt = jnp.dtype(io_dtype) if io_dtype is not None else jnp.dtype(out_dtype)
    item = dt.itemsize

    # Lane-pad channel axes (dense vregs, unmasked stores, full MXU rows).
    Cp = _round_up(C_in, LANE)
    Gp = _round_up(G, LANE)
    Sp = _round_up(S, LANE)
    # TODO(synk): for tiny channel counts (2*C_in <= 128) skip the 128-lane padding /
    # pack taps into one lane block to avoid HBM read/write amplification.

    has_h = h_btc is not None
    sub = 8 if item >= 4 else (16 if item == 2 else 32)

    # --- time tiling: big tiles amortize per-step overhead; shrink to the VMEM budget.
    tt = max(sub, min(_round_up(tm, sub), _round_up(max(T, 1), sub)))
    while tt > sub and _estimate_vmem_bytes(tt, Cp, Gp, Sp, dil, has_h,
                                            return_residual, item) > _VMEM_BUDGET:
        tt = max(sub, _round_up(tt // 2, sub))
    nT = _cdiv(T, tt)
    # v7x has 2 TensorCores per chip: prefer an even total number of grid steps.
    if (B * nT) % 2 == 1:
        tt2 = max(sub, _round_up(_cdiv(T, nT + 1), sub))
        nT2 = _cdiv(T, tt2)
        if (B * nT2) % 2 == 0:
            tt, nT = tt2, nT2
    Tp = nT * tt

    # --- input x: one pad (channels -> Cp, time end -> Tp); no duplicated shifted copy.
    xp = jnp.pad(x_btc, ((0, 0), (0, Tp - T), (0, Cp - C_in))).astype(dt)

    # --- tiny causal halo: rows [j*tt - dil, j*tt) of x for each tile j (zeros for t<0).
    t_idx = jnp.arange(nT)[:, None] * tt - dil + jnp.arange(dil)[None, :]   # (nT, dil)
    halo = jnp.where((t_idx >= 0)[None, :, :, None],
                     xp[:, jnp.clip(t_idx, 0, Tp - 1), :],
                     0).astype(dt)                                          # (B,nT,dil,Cp)

    if has_h:
        hp = _split_pad_gates(h_btc, G, Gp)            # identity when G % 128 == 0
        hp = jnp.pad(hp, ((0, 0), (0, Tp - T), (0, 0))).astype(dt)

    # --- dilated-conv weights: one (Cp, 2Gp) matrix per tap, gate halves lane-aligned.
    w_d = params["w_dilate"]                           # (2G, C_in, kernel_size)
    w1 = jnp.zeros((Cp, 2 * Gp), jnp.float32).at[:C_in].set(
        _split_pad_gates(w_d[:, :, 1].T, G, Gp)).astype(dt)      # current sample
    w0 = jnp.zeros((Cp, 2 * Gp), jnp.float32).at[:C_in].set(
        _split_pad_gates(w_d[:, :, 0].T, G, Gp)).astype(dt)      # sample t - dilation
    bd = _split_pad_gates(params["b_dilate"].reshape(1, 2 * G), G, Gp).astype(jnp.float32)

    wskip = jnp.zeros((Gp, Sp), jnp.float32).at[:G, :S].set(
        params["w_skip"][:, :, 0].T).astype(dt)
    bskip = jnp.zeros((1, Sp), jnp.float32).at[0, :S].set(params["b_skip"])
    if return_residual:
        wres = jnp.zeros((Gp, Cp), jnp.float32).at[:G, :C_in].set(
            params["w_res"][:, :, 0].T).astype(dt)
        bres = jnp.zeros((1, Cp), jnp.float32).at[0, :C_in].set(params["b_res"])

    # --- specs
    row = lambda c: pl.BlockSpec((None, tt, c), lambda b, j: (b, j, 0))
    full = lambda shape: pl.BlockSpec(shape, lambda b, j: (0,) * len(shape))
    halo_spec = pl.BlockSpec((None, None, dil, Cp), lambda b, j: (b, j, 0, 0))

    in_specs = [row(Cp), halo_spec]
    args = [xp, halo]
    if has_h:
        in_specs.append(row(2 * Gp))
        args.append(hp)
    in_specs += [full((Cp, 2 * Gp)), full((Cp, 2 * Gp)), full((1, 2 * Gp))]
    args += [w1, w0, bd]
    if return_residual:
        in_specs += [full((Gp, Cp)), full((1, Cp))]
        args += [wres, bres]
    in_specs += [full((Gp, Sp)), full((1, Sp))]
    args += [wskip, bskip]

    out_shapes, out_specs = [], []
    if return_residual:
        # NOTE: with io_dtype=bf16 the residual stream is also written in bf16; for very
        # deep stacks keep the residual in f32 (io_dtype=None) if rounding accumulates.
        out_shapes.append(jax.ShapeDtypeStruct((B, Tp, Cp), dt))
        out_specs.append(row(Cp))
    out_shapes.append(jax.ShapeDtypeStruct((B, Tp, Sp), dt))
    out_specs.append(row(Sp))

    est = _estimate_vmem_bytes(tt, Cp, Gp, Sp, dil, has_h, return_residual, item)
    vmem_limit = int(min(_VMEM_LIMIT_CAP,
                         max(32 * 1024 * 1024, 1.5 * est + (4 << 20))))

    kernel = functools.partial(_wavenet_block_kernel, gate_p=Gp,
                               has_h=has_h, has_res=return_residual)

    outs = pl.pallas_call(
        kernel,
        out_shape=out_shapes,
        grid_spec=pltpu.PrefetchScalarGridSpec(
            num_scalar_prefetch=0,
            grid=(B, nT),
            in_specs=in_specs,
            out_specs=out_specs,
        ),
        compiler_params=pltpu.CompilerParams(
            dimension_semantics=("parallel", "parallel"),
            vmem_limit_bytes=vmem_limit),
    )(*args)

    if return_residual:
        res_p, skip_p = outs[0], outs[1]
        if return_padded:
            return res_p, skip_p
        return res_p[:, :T, :C_in], skip_p[:, :T, :S]
    skip_p = outs[0]
    if return_padded:
        return skip_p
    return skip_p[:, :T, :S]


# ----------------------------------------------------------------------------
# NCT (PyTorch Conv1d layout) wrapper
# ----------------------------------------------------------------------------
def wavenet_block_forward(x, params, h=None, *, dilation=1, kernel_size=2,
                          return_residual=True, tm=1024, io_dtype=None):
    """x: (B, C_in, T);  h: optional (B, 2*gate_channels, T)."""
    x_btc = jnp.transpose(x, (0, 2, 1))
    h_btc = None if h is None else jnp.transpose(h, (0, 2, 1))
    out = wavenet_block_apply_btc(x_btc, params, h_btc, dilation=dilation,
                                  kernel_size=kernel_size,
                                  return_residual=return_residual,
                                  tm=tm, io_dtype=io_dtype)
    if return_residual:
        res, skip = out
        return jnp.transpose(res, (0, 2, 1)), jnp.transpose(skip, (0, 2, 1))
    return jnp.transpose(out, (0, 2, 1))


# ----------------------------------------------------------------------------
# Deterministic parameter init (mirrors shapes & xavier-uniform of the module)
# ----------------------------------------------------------------------------
def init_params(key, in_channels, skip_channels, gate_channels, kernel_size=2):
    def xavier(key, shape, gain):
        fan_out, fan_in_c, k = shape
        fan_in = fan_in_c * k
        fan_out_eff = fan_out * k
        limit = gain * math.sqrt(6.0 / (fan_in + fan_out_eff))
        return jax.random.uniform(key, shape, jnp.float32, -limit, limit)

    def bias(key, out_ch, fan_in):
        bound = 1.0 / math.sqrt(fan_in)
        return jax.random.uniform(key, (out_ch,), jnp.float32, -bound, bound)

    k = jax.random.split(key, 6)
    gain_tanh = 5.0 / 3.0
    gain_relu = math.sqrt(2.0)
    gain_lin = 1.0
    return {
        "w_dilate": xavier(k[0], (2 * gate_channels, in_channels, kernel_size), gain_tanh),
        "b_dilate": bias(k[1], 2 * gate_channels, in_channels * kernel_size),
        "w_skip": xavier(k[2], (skip_channels, gate_channels, 1), gain_relu),
        "b_skip": bias(k[3], skip_channels, gate_channels),
        "w_res": xavier(k[4], (in_channels, gate_channels, 1), gain_lin),
        "b_res": bias(k[5], in_channels, gate_channels),
    }


# ----------------------------------------------------------------------------
# Pure-JAX reference (lax conv) for correctness check
# ----------------------------------------------------------------------------
def reference_forward(x, params, h=None, *, dilation=1, kernel_size=2,
                      return_residual=True):
    pad = (kernel_size - 1) * dilation
    inp = jnp.pad(x, ((0, 0), (0, 0), (pad, 0)))
    dn = ("NCH", "OIH", "NCH")
    out = lax.conv_general_dilated(inp, params["w_dilate"], (1,), "VALID",
                                   rhs_dilation=(dilation,),
                                   dimension_numbers=dn)
    out = out + params["b_dilate"][None, :, None]
    if h is not None:
        out = out + h
    G = params["w_skip"].shape[1]
    t, s = out[:, :G, :], out[:, G:, :]
    gated = jnp.tanh(t) * jax.nn.sigmoid(s)
    skip = lax.conv_general_dilated(gated, params["w_skip"], (1,), "VALID",
                                    dimension_numbers=dn) + params["b_skip"][None, :, None]
    if not return_residual:
        return skip
    res = lax.conv_general_dilated(gated, params["w_res"], (1,), "VALID",
                                   dimension_numbers=dn) + params["b_res"][None, :, None] + x
    return res, skip


if __name__ == "__main__":
    B, C_in, T = 2, 4, 16
    gate_channels, skip_channels = 8, 8
    dilation, kernel_size = 2, 2

    key = jax.random.PRNGKey(0)
    kx, kh, kp = jax.random.split(key, 3)
    x = jax.random.normal(kx, (B, C_in, T), dtype=jnp.float32)
    h = jax.random.normal(kh, (B, 2 * gate_channels, T), dtype=jnp.float32)
    params = init_params(kp, C_in, skip_channels, gate_channels, kernel_size)

    # 1) h=None (no conditioning stream DMA'd)
    res, skip = wavenet_block_forward(x, params, None, dilation=dilation,
                                      kernel_size=kernel_size)
    jax.block_until_ready((res, skip))
    res_ref, skip_ref = reference_forward(x, params, None, dilation=dilation,
                                          kernel_size=kernel_size)
    assert res.shape == (B, C_in, T) and skip.shape == (B, skip_channels, T)
    assert jnp.allclose(res, res_ref, atol=1e-4, rtol=1e-4)
    assert jnp.allclose(skip, skip_ref, atol=1e-4, rtol=1e-4)

    # 2) with conditioning h
    res_h, skip_h = wavenet_block_forward(x, params, h, dilation=dilation,
                                          kernel_size=kernel_size)
    jax.block_until_ready((res_h, skip_h))
    res_hr, skip_hr = reference_forward(x, params, h, dilation=dilation,
                                        kernel_size=kernel_size)
    assert jnp.allclose(res_h, res_hr, atol=1e-4, rtol=1e-4)
    assert jnp.allclose(skip_h, skip_hr, atol=1e-4, rtol=1e-4)

    # 3) skip-only path (return_residual=False)
    skip_only = wavenet_block_forward(x, params, None, dilation=dilation,
                                      kernel_size=kernel_size, return_residual=False)
    jax.block_until_ready(skip_only)
    skip_only_ref = reference_forward(x, params, None, dilation=dilation,
                                      kernel_size=kernel_size, return_residual=False)
    assert jnp.allclose(skip_only, skip_only_ref, atol=1e-4, rtol=1e-4)

    # 4) bf16 I/O path (inputs AND outputs bf16, f32 accumulation inside).
    res_b, skip_b = wavenet_block_forward(x, params, None, dilation=dilation,
                                          kernel_size=kernel_size,
                                          io_dtype=jnp.bfloat16)
    jax.block_until_ready((res_b, skip_b))
    assert jnp.allclose(res_b.astype(jnp.float32), res_ref, atol=0.2, rtol=0.1)
    assert jnp.allclose(skip_b.astype(jnp.float32), skip_ref, atol=0.2, rtol=0.1)

    print("KERNEL_OK")
</pallas_src>

<mosaic_0001>
module attributes {stable_mosaic.version = 11 : i64} {
  func.func @_wavenet_block_kernel(%arg0: i32, %arg1: i32, %arg2: memref<1x16x128xf32, #tpu.memory_space<vmem>>, %arg3: memref<1x1x2x128xf32, #tpu.memory_space<vmem>>, %arg4: memref<128x256xf32, #tpu.memory_space<vmem>>, %arg5: memref<128x256xf32, #tpu.memory_space<vmem>>, %arg6: memref<1x256xf32, #tpu.memory_space<vmem>>, %arg7: memref<128x128xf32, #tpu.memory_space<vmem>>, %arg8: memref<1x128xf32, #tpu.memory_space<vmem>>, %arg9: memref<128x128xf32, #tpu.memory_space<vmem>>, %arg10: memref<1x128xf32, #tpu.memory_space<vmem>>, %arg11: memref<1x16x128xf32, #tpu.memory_space<vmem>>, %arg12: memref<1x16x128xf32, #tpu.memory_space<vmem>>) attributes {dimension_semantics = [#tpu.dimension_semantics<parallel>, #tpu.dimension_semantics<parallel>], iteration_bounds = array<i64: 2, 1>, scalar_prefetch = 0 : i64, scratch_operands = 0 : i64, tpu.core_type = #tpu.core_type<tc>, window_params = [{transform_indices = @transform_0, window_bounds = array<i64: 1, 16, 128>}, {transform_indices = @transform_1, window_bounds = array<i64: 1, 1, 2, 128>}, {pipeline_mode = #tpu.pipeline_mode<synchronous>, transform_indices = @transform_2, window_bounds = array<i64: 128, 256>}, {pipeline_mode = #tpu.pipeline_mode<synchronous>, transform_indices = @transform_3, window_bounds = array<i64: 128, 256>}, {pipeline_mode = #tpu.pipeline_mode<synchronous>, transform_indices = @transform_4, window_bounds = array<i64: 1, 256>}, {pipeline_mode = #tpu.pipeline_mode<synchronous>, transform_indices = @transform_5, window_bounds = array<i64: 128, 128>}, {pipeline_mode = #tpu.pipeline_mode<synchronous>, transform_indices = @transform_6, window_bounds = array<i64: 1, 128>}, {pipeline_mode = #tpu.pipeline_mode<synchronous>, transform_indices = @transform_7, window_bounds = array<i64: 128, 128>}, {pipeline_mode = #tpu.pipeline_mode<synchronous>, transform_indices = @transform_8, window_bounds = array<i64: 1, 128>}, {transform_indices = @transform_9, window_bounds = array<i64: 1, 16, 128>}, {transform_indices = @transform_10, window_bounds = array<i64: 1, 16, 128>}]} {
    %c0 = arith.constant 0 : index
    %c0_0 = arith.constant 0 : index
    %c0_1 = arith.constant 0 : index
    %0 = vector.load %arg2[%c0, %c0_0, %c0_1] : memref<1x16x128xf32, #tpu.memory_space<vmem>>, vector<1x16x128xf32>
    %1 = vector.shape_cast %0 : vector<1x16x128xf32> to vector<16x128xf32>
    %c0_2 = arith.constant 0 : index
    %c0_3 = arith.constant 0 : index
    %c0_4 = arith.constant 0 : index
    %c0_5 = arith.constant 0 : index
    %2 = vector.load %arg3[%c0_2, %c0_3, %c0_4, %c0_5] : memref<1x1x2x128xf32, #tpu.memory_space<vmem>>, vector<1x1x2x128xf32>
    %3 = vector.shape_cast %2 : vector<1x1x2x128xf32> to vector<2x128xf32>
    %4 = tpu.concatenate %3, %1 in 0 : vector<2x128xf32>, vector<16x128xf32> -> vector<18x128xf32>
    %5 = vector.extract_strided_slice %4 {offsets = [0, 0], sizes = [16, 128], strides = [1, 1]} : vector<18x128xf32> to vector<16x128xf32>
    %c0_6 = arith.constant 0 : index
    %c0_7 = arith.constant 0 : index
    %6 = vector.load %arg4[%c0_6, %c0_7] : memref<128x256xf32, #tpu.memory_space<vmem>>, vector<128x256xf32>
    %cst = arith.constant dense<0.000000e+00> : vector<16x256xf32>
    %7 = tpu.matmul %1, %6, %cst {dimension_numbers = #tpu.dot_dimension_numbers<[1], [0], [0], [1], [0, 0, 1, 1], [], []>} : vector<16x128xf32>, vector<128x256xf32>, vector<16x256xf32> -> vector<16x256xf32>
    %c0_8 = arith.constant 0 : index
    %c0_9 = arith.constant 0 : index
    %8 = vector.load %arg5[%c0_8, %c0_9] : memref<128x256xf32, #tpu.memory_space<vmem>>, vector<128x256xf32>
    %cst_10 = arith.constant dense<0.000000e+00> : vector<16x256xf32>
    %9 = tpu.matmul %5, %8, %cst_10 {dimension_numbers = #tpu.dot_dimension_numbers<[1], [0], [0], [1], [0, 0, 1, 1], [], []>} : vector<16x128xf32>, vector<128x256xf32>, vector<16x256xf32> -> vector<16x256xf32>
    %10 = arith.addf %7, %9 : vector<16x256xf32>
    %c0_11 = arith.constant 0 : index
    %c0_12 = arith.constant 0 : index
    %11 = vector.load %arg6[%c0_11, %c0_12] : memref<1x256xf32, #tpu.memory_space<vmem>>, vector<1x256xf32>
    %12 = vector.broadcast %11 : vector<1x256xf32> to vector<16x256xf32>
    %13 = arith.addf %10, %12 : vector<16x256xf32>
    %14 = vector.extract_strided_slice %13 {offsets = [0, 0], sizes = [16, 128], strides = [1, 1]} : vector<16x256xf32> to vector<16x128xf32>
    %15 = vector.extract_strided_slice %13 {offsets = [0, 128], sizes = [16, 128], strides = [1, 1]} : vector<16x256xf32> to vector<16x128xf32>
    %16 = math.tanh %14 : vector<16x128xf32>
    %17 = arith.negf %15 : vector<16x128xf32>
    %18 = math.exp %17 : vector<16x128xf32>
    %cst_13 = arith.constant 1.000000e+00 : f32
    %19 = vector.broadcast %cst_13 : f32 to vector<16x128xf32>
    %20 = arith.addf %19, %18 : vector<16x128xf32>
    %21 = arith.divf %19, %20 : vector<16x128xf32>
    %22 = arith.mulf %16, %21 : vector<16x128xf32>
    %c0_14 = arith.constant 0 : index
    %c0_15 = arith.constant 0 : index
    %23 = vector.load %arg9[%c0_14, %c0_15] : memref<128x128xf32, #tpu.memory_space<vmem>>, vector<128x128xf32>
    %cst_16 = arith.constant dense<0.000000e+00> : vector<16x128xf32>
    %24 = tpu.matmul %22, %23, %cst_16 {dimension_numbers = #tpu.dot_dimension_numbers<[1], [0], [0], [1], [0, 0, 1, 1], [], []>} : vector<16x128xf32>, vector<128x128xf32>, vector<16x128xf32> -> vector<16x128xf32>
    %c0_17 = arith.constant 0 : index
    %c0_18 = arith.constant 0 : index
    %25 = vector.load %arg10[%c0_17, %c0_18] : memref<1x128xf32, #tpu.memory_space<vmem>>, vector<1x128xf32>
    %26 = vector.broadcast %25 : vector<1x128xf32> to vector<16x128xf32>
    %27 = arith.addf %24, %26 : vector<16x128xf32>
    %c0_19 = arith.constant 0 : index
    %c0_20 = arith.constant 0 : index
    %c0_21 = arith.constant 0 : index
    %28 = vector.load %arg12[%c0_19, %c0_20, %c0_21] : memref<1x16x128xf32, #tpu.memory_space<vmem>>, vector<1x16x128xf32>
    %29 = vector.shape_cast %28 : vector<1x16x128xf32> to vector<16x128xf32>
    %30 = vector.shape_cast %27 : vector<16x128xf32> to vector<1x16x128xf32>
    tpu.vector_store %arg12[%c0_19, %c0_20, %c0_21], %30 {strides = array<i32>} : memref<1x16x128xf32, #tpu.memory_space<vmem>>, vector<1x16x128xf32>,
    %c0_22 = arith.constant 0 : index
    %c0_23 = arith.constant 0 : index
    %31 = vector.load %arg7[%c0_22, %c0_23] : memref<128x128xf32, #tpu.memory_space<vmem>>, vector<128x128xf32>
    %cst_24 = arith.constant dense<0.000000e+00> : vector<16x128xf32>
    %32 = tpu.matmul %22, %31, %cst_24 {dimension_numbers = #tpu.dot_dimension_numbers<[1], [0], [0], [1], [0, 0, 1, 1], [], []>} : vector<16x128xf32>, vector<128x128xf32>, vector<16x128xf32> -> vector<16x128xf32>
    %c0_25 = arith.constant 0 : index
    %c0_26 = arith.constant 0 : index
    %33 = vector.load %arg8[%c0_25, %c0_26] : memref<1x128xf32, #tpu.memory_space<vmem>>, vector<1x128xf32>
    %34 = vector.broadcast %33 : vector<1x128xf32> to vector<16x128xf32>
    %35 = arith.addf %32, %34 : vector<16x128xf32>
    %36 = arith.addf %35, %1 : vector<16x128xf32>
    %c0_27 = arith.constant 0 : index
    %c0_28 = arith.constant 0 : index
    %c0_29 = arith.constant 0 : index
    %37 = vector.load %arg11[%c0_27, %c0_28, %c0_29] : memref<1x16x128xf32, #tpu.memory_space<vmem>>, vector<1x16x128xf32>
    %38 = vector.shape_cast %37 : vector<1x16x128xf32> to vector<16x128xf32>
    %39 = vector.shape_cast %36 : vector<16x128xf32> to vector<1x16x128xf32>
    tpu.vector_store %arg11[%c0_27, %c0_28, %c0_29], %39 {strides = array<i32>} : memref<1x16x128xf32, #tpu.memory_space<vmem>>, vector<1x16x128xf32>,
    return
  }
  func.func @transform_0(%arg0: i32, %arg1: i32) -> (i32, i32, i32) {
    %c0_i32 = arith.constant 0 : i32
    %c0_i32_0 = arith.constant 0 : i32
    return %arg0, %arg1, %c0_i32 : i32, i32, i32
  }
  func.func @transform_1(%arg0: i32, %arg1: i32) -> (i32, i32, i32, i32) {
    %c0_i32 = arith.constant 0 : i32
    %c0_i32_0 = arith.constant 0 : i32
    %c0_i32_1 = arith.constant 0 : i32
    return %arg0, %arg1, %c0_i32, %c0_i32_0 : i32, i32, i32, i32
  }
  func.func @transform_2(%arg0: i32, %arg1: i32) -> (i32, i32) {
    %c0_i32 = arith.constant 0 : i32
    %c0_i32_0 = arith.constant 0 : i32
    %c0_i32_1 = arith.constant 0 : i32
    return %c0_i32, %c0_i32_0 : i32, i32
  }
  func.func @transform_3(%arg0: i32, %arg1: i32) -> (i32, i32) {
    %c0_i32 = arith.constant 0 : i32
    %c0_i32_0 = arith.constant 0 : i32
    %c0_i32_1 = arith.constant 0 : i32
    return %c0_i32, %c0_i32_0 : i32, i32
  }
  func.func @transform_4(%arg0: i32, %arg1: i32) -> (i32, i32) {
    %c0_i32 = arith.constant 0 : i32
    %c0_i32_0 = arith.constant 0 : i32
    %c0_i32_1 = arith.constant 0 : i32
    return %c0_i32, %c0_i32_0 : i32, i32
  }
  func.func @transform_5(%arg0: i32, %arg1: i32) -> (i32, i32) {
    %c0_i32 = arith.constant 0 : i32
    %c0_i32_0 = arith.constant 0 : i32
    %c0_i32_1 = arith.constant 0 : i32
    return %c0_i32, %c0_i32_0 : i32, i32
  }
  func.func @transform_6(%arg0: i32, %arg1: i32) -> (i32, i32) {
    %c0_i32 = arith.constant 0 : i32
    %c0_i32_0 = arith.constant 0 : i32
    %c0_i32_1 = arith.constant 0 : i32
    return %c0_i32, %c0_i32_0 : i32, i32
  }
  func.func @transform_7(%arg0: i32, %arg1: i32) -> (i32, i32) {
    %c0_i32 = arith.constant 0 : i32
    %c0_i32_0 = arith.constant 0 : i32
    %c0_i32_1 = arith.constant 0 : i32
    return %c0_i32, %c0_i32_0 : i32, i32
  }
  func.func @transform_8(%arg0: i32, %arg1: i32) -> (i32, i32) {
    %c0_i32 = arith.constant 0 : i32
    %c0_i32_0 = arith.constant 0 : i32
    %c0_i32_1 = arith.constant 0 : i32
    return %c0_i32, %c0_i32_0 : i32, i32
  }
  func.func @transform_9(%arg0: i32, %arg1: i32) -> (i32, i32, i32) {
    %c0_i32 = arith.constant 0 : i32
    %c0_i32_0 = arith.constant 0 : i32
    return %arg0, %arg1, %c0_i32 : i32, i32, i32
  }
  func.func @transform_10(%arg0: i32, %arg1: i32) -> (i32, i32, i32) {
    %c0_i32 = arith.constant 0 : i32
    %c0_i32_0 = arith.constant 0 : i32
    return %arg0, %arg1, %c0_i32 : i32, i32, i32
  }
}

</mosaic_0001>

<llo_original>
// kernel: tpu_custom_call.1
$region0: #{tpu_custom_call.1}
  #allocation0 [shape = 'u32[]', space=smem, size = 0x4, offset = 0x4, fixed_abs, tag = 'smem constant byte address 0x4 - core index']
  #allocation1 [shape = 'u32[144,128]{1,0:T(1,128)}', space=vmem, size = 0x12000, scoped, tag = 'internal scratch']
  %s0 = inlined_call_operand.hbm [shape: f32[2,16,128], index: 0, kind: input, shape index: {}]
  %s1 = inlined_call_operand.hbm [shape: f32[2,1,2,128], index: 1, kind: input, shape index: {}]
  %s2 = inlined_call_operand.hbm [shape: f32[128,256], index: 2, kind: input, shape index: {}]
  %s3 = inlined_call_operand.hbm [shape: f32[128,256], index: 3, kind: input, shape index: {}]
  %s4 = inlined_call_operand.vmem [shape: f32[1,256], index: 4, kind: input, shape index: {}]
  %s5 = inlined_call_operand.hbm [shape: f32[128,128], index: 5, kind: input, shape index: {}]
  %s6 = inlined_call_operand.vmem [shape: f32[1,128], index: 6, kind: input, shape index: {}]
  %s7 = inlined_call_operand.hbm [shape: f32[128,128], index: 7, kind: input, shape index: {}]
  %s8 = inlined_call_operand.vmem [shape: f32[1,128], index: 8, kind: input, shape index: {}]
  %s9 = inlined_call_operand.hbm [shape: f32[2,16,128], index: 9, kind: output, shape index: {0}]
  %s10 = inlined_call_operand.hbm [shape: f32[2,16,128], index: 10, kind: output, shape index: {1}]
  %11 = xla_tuple %s9, %s10
  %s12 = sld [smem:[#allocation0]]
  $region101: #{tpu_custom_call.1} parent=0
    _
  %s14 = ssub.s32 1, %s12
  %s15 = scalar_select 0, %s14, %s12
  $region1: #{tpu_custom_call.1} parent=0
    #allocation2 [shape = 'u8[16384]{0}', space=vmem, size = 0x4000, scoped, tag = 'input window, operand 0']
    #allocation3 [shape = 's32[2]{0}', space=sflag, size = 0x8, scoped, tag = 'scoped memory for tpu_custom_call.1']
    #allocation4 [shape = 's32[2]{0}', space=sflag, size = 0x8, scoped, tag = 'scoped memory for tpu_custom_call.1']
    #allocation5 [shape = 'u8[2048]{0}', space=vmem, size = 0x800, scoped, tag = 'input window, operand 1']
    #allocation6 [shape = 's32[2]{0}', space=sflag, size = 0x8, scoped, tag = 'scoped memory for tpu_custom_call.1']
    #allocation7 [shape = 'u8[131072]{0}', space=vmem, size = 0x20000, scoped, tag = 'input window, operand 2, single buffered']
    #allocation8 [shape = 'u8[131072]{0}', space=vmem, size = 0x20000, scoped, tag = 'input window, operand 3, single buffered']
    #allocation9 [shape = 's32[1]{0}', space=sflag, size = 0x4, scoped, tag = 'scoped memory for tpu_custom_call.1']
    #allocation10 [shape = 'u8[65536]{0}', space=vmem, size = 0x10000, scoped, tag = 'input window, operand 5, single buffered']
    #allocation11 [shape = 'u8[65536]{0}', space=vmem, size = 0x10000, scoped, tag = 'input window, operand 7, single buffered']
    #allocation12 [shape = 's32[1]{0}', space=sflag, size = 0x4, scoped, tag = 'scoped memory for tpu_custom_call.1']
    #allocation13 [shape = 'u8[16384]{0}', space=vmem, size = 0x4000, scoped, tag = 'output window, operand 0']
    #allocation14 [shape = 'u8[16384]{0}', space=vmem, size = 0x4000, scoped, tag = 'output window, operand 1']
    #allocation15 [shape = 's32[2]{0}', space=sflag, size = 0x8, scoped, tag = 'scoped memory for tpu_custom_call.1']
    %16 = vsyncpa [#allocation3], 0
    %s17 = scalar_lea.sflag [#allocation3], 1
    %18 = vsyncpa %s17, 0
    %19 = vsyncpa [#allocation6], 0
    %s20 = scalar_lea.sflag [#allocation6], 1
    %21 = vsyncpa %s20, 0
    %22 = vsyncpa [#allocation9], 0
    %23 = vsyncpa [#allocation12], 0
    %24 = vsyncpa [#allocation4], 0
    %s25 = scalar_lea.sflag [#allocation4], 1
    %26 = vsyncpa %s25, 0
    %27 = vsyncpa [#allocation15], 0
    %s28 = scalar_lea.sflag [#allocation15], 1
    %29 = vsyncpa %s28, 0
    loop: start=0, step=1, limit=4
    $region2: #{tpu_custom_call.1} parent=1 // loop_pre_header
      _
    $region3: #{tpu_custom_call.1} parent=1 // loop_header
      %s31 = sphi 0, %s35
      %p32 = scmp.ge.s32.totalorder %s31, 4
      %s38 = sphi 0, %s50
      %s39 = sphi 0, %s46
      %s40 = sphi 0, %s38
      %s41 = sphi 0, %s39
      %s42 = sphi 0, %s40
      %s43 = sphi 0, %s41
      %s55 = sphi 0, %s57
      %s58 = sphi 0, %s55
      %s59 = sphi 0, %s58
      %s75 = sphi 0, %s59
      %s83 = sphi 0, %s85
      %s86 = sphi 0, %s83
      %s87 = sphi 0, %s86
      %s103 = sphi 0, %s87
      %s107 = sphi 0, %s107
      %s109 = sphi 0, %s107
      %s110 = sphi 0, %s109
      %s124 = sphi 0, %s110
      %s128 = sphi 0, %s128
      %s130 = sphi 0, %s128
      %s131 = sphi 0, %s130
      %s145 = sphi 0, %s131
      %s149 = sphi 0, %s149
      %s151 = sphi 0, %s149
      %s152 = sphi 0, %s151
      %s166 = sphi 0, %s152
      %s170 = sphi 0, %s170
      %s172 = sphi 0, %s170
      %s173 = sphi 0, %s172
      %s187 = sphi 0, %s173
      %s191 = sphi 0, %s191
      %s193 = sphi 0, %s191
      %s194 = sphi 0, %s193
      %s208 = sphi 0, %s194
      %s212 = sphi 0, %s212
      %s214 = sphi 0, %s212
      %s215 = sphi 0, %s214
      %s229 = sphi 0, %s215
      %s233 = sphi 0, %s233
      %s235 = sphi 0, %s233
      %s236 = sphi 0, %s235
      %s250 = sphi 0, %s236
      %s258 = sphi 0, %s260
      %s261 = sphi 0, %s258
      %s262 = sphi 0, %s261
      %s278 = sphi 0, %s262
      %s286 = sphi 0, %s288
      %s289 = sphi 0, %s286
      %s290 = sphi 0, %s289
      %s306 = sphi 0, %s290
    $region4: #{tpu_custom_call.1} parent=1 // loop_header_branch
      %34 = sbr.rel (%p32) target = $region8
    $region5: #{tpu_custom_call.1} parent=1 // loop_body
      %s36 = ssub.s32 %s31, 1
      %s37 = ssub.s32 %s31, 2
      %s44 = sadd.s32 1, %s39
      %p45 = scmp.ge.s32.totalorder %s44, 1
      %s46 = scalar_select %p45, 0, %s44
      %s47 = sadd.s32 1, %s38
      %s48 = scalar_select %p45, %s47, %s38
      %p49 = scmp.ge.s32.totalorder %s48, 2
      %s50 = scalar_select %p49, 0, %s48
      %s51 = ssub.s32 %s38, %s50
      %s52 = ssub.s32 %s39, %s46
      %s53 = sor.u32 %s51, %s52
      %p54 = scmp.eq.s32.totalorder %s53, 0
      %s56 = sadd.s32 %s55, 1
      %s57 = scalar_select %p54, %s55, %s56
      %p60 = pneg %p54
      %p61 = scmp.eq.s32.totalorder %s31, 1
      %p62 = por %p60, %p61
      %p63 = scmp.ne.s32.totalorder %s55, %s58
      %p64 = scmp.eq.s32.totalorder %s31, 0
      %p65 = por %p63, %p64
      %p66 = scmp.ne.s32.totalorder %s55, %s58
      %p67 = scmp.eq.s32.totalorder %s36, 1
      %p68 = por %p66, %p67
      %p69 = scmp.ne.s32.totalorder %s58, %s59
      %p70 = scmp.eq.s32.totalorder %s36, 0
      %p71 = por %p69, %p70
      %p72 = scmp.ne.s32.totalorder %s58, %s59
      %p73 = scmp.eq.s32.totalorder %s37, 1
      %p74 = por %p72, %p73
      %p76 = scmp.ne.s32.totalorder %s59, %s75
      %p77 = scmp.eq.s32.totalorder %s37, 0
      %p78 = por %p76, %p77
      %s79 = ssub.s32 %s38, %s50
      %s80 = ssub.s32 %s39, %s46
      %s81 = sor.u32 %s79, %s80
      %p82 = scmp.eq.s32.totalorder %s81, 0
      %s84 = sadd.s32 %s83, 1
      %s85 = scalar_select %p82, %s83, %s84
      %p88 = pneg %p82
      %p89 = scmp.eq.s32.totalorder %s31, 1
      %p90 = por %p88, %p89
      %p91 = scmp.ne.s32.totalorder %s83, %s86
      %p92 = scmp.eq.s32.totalorder %s31, 0
      %p93 = por %p91, %p92
      %p94 = scmp.ne.s32.totalorder %s83, %s86
      %p95 = scmp.eq.s32.totalorder %s36, 1
      %p96 = por %p94, %p95
      %p97 = scmp.ne.s32.totalorder %s86, %s87
      %p98 = scmp.eq.s32.totalorder %s36, 0
      %p99 = por %p97, %p98
      %p100 = scmp.ne.s32.totalorder %s86, %s87
      %p101 = scmp.eq.s32.totalorder %s37, 1
      %p102 = por %p100, %p101
      %p104 = scmp.ne.s32.totalorder %s87, %s103
      %p105 = scmp.eq.s32.totalorder %s37, 0
      %p106 = por %p104, %p105
      %s108 = sadd.s32 %s107, 1
      %p111 = scmp.eq.s32.totalorder %s31, 1
      %p112 = scmp.ne.s32.totalorder %s107, %s109
      %p113 = scmp.eq.s32.totalorder %s31, 0
      %p114 = por %p112, %p113
      %p115 = scmp.ne.s32.totalorder %s107, %s109
      %p116 = scmp.eq.s32.totalorder %s36, 1
      %p117 = por %p115, %p116
      %p118 = scmp.ne.s32.totalorder %s109, %s110
      %p119 = scmp.eq.s32.totalorder %s36, 0
      %p120 = por %p118, %p119
      %p121 = scmp.ne.s32.totalorder %s109, %s110
      %p122 = scmp.eq.s32.totalorder %s37, 1
      %p123 = por %p121, %p122
      %p125 = scmp.ne.s32.totalorder %s110, %s124
      %p126 = scmp.eq.s32.totalorder %s37, 0
      %p127 = por %p125, %p126
      %s129 = sadd.s32 %s128, 1
      %p132 = scmp.eq.s32.totalorder %s31, 1
      %p133 = scmp.ne.s32.totalorder %s128, %s130
      %p134 = scmp.eq.s32.totalorder %s31, 0
      %p135 = por %p133, %p134
      %p136 = scmp.ne.s32.totalorder %s128, %s130
      %p137 = scmp.eq.s32.totalorder %s36, 1
      %p138 = por %p136, %p137
      %p139 = scmp.ne.s32.totalorder %s130, %s131
      %p140 = scmp.eq.s32.totalorder %s36, 0
      %p141 = por %p139, %p140
      %p142 = scmp.ne.s32.totalorder %s130, %s131
      %p143 = scmp.eq.s32.totalorder %s37, 1
      %p144 = por %p142, %p143
      %p146 = scmp.ne.s32.totalorder %s131, %s145
      %p147 = scmp.eq.s32.totalorder %s37, 0
      %p148 = por %p146, %p147
      %s150 = sadd.s32 %s149, 1
      %p153 = scmp.eq.s32.totalorder %s31, 1
      %p154 = scmp.ne.s32.totalorder %s149, %s151
      %p155 = scmp.eq.s32.totalorder %s31, 0
      %p156 = por %p154, %p155
      %p157 = scmp.ne.s32.totalorder %s149, %s151
      %p158 = scmp.eq.s32.totalorder %s36, 1
      %p159 = por %p157, %p158
      %p160 = scmp.ne.s32.totalorder %s151, %s152
      %p161 = scmp.eq.s32.totalorder %s36, 0
      %p162 = por %p160, %p161
      %p163 = scmp.ne.s32.totalorder %s151, %s152
      %p164 = scmp.eq.s32.totalorder %s37, 1
      %p165 = por %p163, %p164
      %p167 = scmp.ne.s32.totalorder %s152, %s166
      %p168 = scmp.eq.s32.totalorder %s37, 0
      %p169 = por %p167, %p168
      %s171 = sadd.s32 %s170, 1
      %p174 = scmp.eq.s32.totalorder %s31, 1
      %p175 = scmp.ne.s32.totalorder %s170, %s172
      %p176 = scmp.eq.s32.totalorder %s31, 0
      %p177 = por %p175, %p176
      %p178 = scmp.ne.s32.totalorder %s170, %s172
      %p179 = scmp.eq.s32.totalorder %s36, 1
      %p180 = por %p178, %p179
      %p181 = scmp.ne.s32.totalorder %s172, %s173
      %p182 = scmp.eq.s32.totalorder %s36, 0
      %p183 = por %p181, %p182
      %p184 = scmp.ne.s32.totalorder %s172, %s173
      %p185 = scmp.eq.s32.totalorder %s37, 1
      %p186 = por %p184, %p185
      %p188 = scmp.ne.s32.totalorder %s173, %s187
      %p189 = scmp.eq.s32.totalorder %s37, 0
      %p190 = por %p188, %p189
      %s192 = sadd.s32 %s191, 1
      %p195 = scmp.eq.s32.totalorder %s31, 1
      %p196 = scmp.ne.s32.totalorder %s191, %s193
      %p197 = scmp.eq.s32.totalorder %s31, 0
      %p198 = por %p196, %p197
      %p199 = scmp.ne.s32.totalorder %s191, %s193
      %p200 = scmp.eq.s32.totalorder %s36, 1
      %p201 = por %p199, %p200
      %p202 = scmp.ne.s32.totalorder %s193, %s194
      %p203 = scmp.eq.s32.totalorder %s36, 0
      %p204 = por %p202, %p203
      %p205 = scmp.ne.s32.totalorder %s193, %s194
      %p206 = scmp.eq.s32.totalorder %s37, 1
      %p207 = por %p205, %p206
      %p209 = scmp.ne.s32.totalorder %s194, %s208
      %p210 = scmp.eq.s32.totalorder %s37, 0
      %p211 = por %p209, %p210
      %s213 = sadd.s32 %s212, 1
      %p216 = scmp.eq.s32.totalorder %s31, 1
      %p217 = scmp.ne.s32.totalorder %s212, %s214
      %p218 = scmp.eq.s32.totalorder %s31, 0
      %p219 = por %p217, %p218
      %p220 = scmp.ne.s32.totalorder %s212, %s214
      %p221 = scmp.eq.s32.totalorder %s36, 1
      %p222 = por %p220, %p221
      %p223 = scmp.ne.s32.totalorder %s214, %s215
      %p224 = scmp.eq.s32.totalorder %s36, 0
      %p225 = por %p223, %p224
      %p226 = scmp.ne.s32.totalorder %s214, %s215
      %p227 = scmp.eq.s32.totalorder %s37, 1
      %p228 = por %p226, %p227
      %p230 = scmp.ne.s32.totalorder %s215, %s229
      %p231 = scmp.eq.s32.totalorder %s37, 0
      %p232 = por %p230, %p231
      %s234 = sadd.s32 %s233, 1
      %p237 = scmp.eq.s32.totalorder %s31, 1
      %p238 = scmp.ne.s32.totalorder %s233, %s235
      %p239 = scmp.eq.s32.totalorder %s31, 0
      %p240 = por %p238, %p239
      %p241 = scmp.ne.s32.totalorder %s233, %s235
      %p242 = scmp.eq.s32.totalorder %s36, 1
      %p243 = por %p241, %p242
      %p244 = scmp.ne.s32.totalorder %s235, %s236
      %p245 = scmp.eq.s32.totalorder %s36, 0
      %p246 = por %p244, %p245
      %p247 = scmp.ne.s32.totalorder %s235, %s236
      %p248 = scmp.eq.s32.totalorder %s37, 1
      %p249 = por %p247, %p248
      %p251 = scmp.ne.s32.totalorder %s236, %s250
      %p252 = scmp.eq.s32.totalorder %s37, 0
      %p253 = por %p251, %p252
      %s254 = ssub.s32 %s38, %s50
      %s255 = ssub.s32 %s39, %s46
      %s256 = sor.u32 %s254, %s255
      %p257 = scmp.eq.s32.totalorder %s256, 0
      %s259 = sadd.s32 %s258, 1
      %s260 = scalar_select %p257, %s258, %s259
      %p263 = pneg %p257
      %p264 = scmp.eq.s32.totalorder %s31, 1
      %p265 = por %p263, %p264
      %p266 = scmp.ne.s32.totalorder %s258, %s261
      %p267 = scmp.eq.s32.totalorder %s31, 0
      %p268 = por %p266, %p267
      %p269 = scmp.ne.s32.totalorder %s258, %s261
      %p270 = scmp.eq.s32.totalorder %s36, 1
      %p271 = por %p269, %p270
      %p272 = scmp.ne.s32.totalorder %s261, %s262
      %p273 = scmp.eq.s32.totalorder %s36, 0
      %p274 = por %p272, %p273
      %p275 = scmp.ne.s32.totalorder %s261, %s262
      %p276 = scmp.eq.s32.totalorder %s37, 1
      %p277 = por %p275, %p276
      %p279 = scmp.ne.s32.totalorder %s262, %s278
      %p280 = scmp.eq.s32.totalorder %s37, 0
      %p281 = por %p279, %p280
      %s282 = ssub.s32 %s38, %s50
      %s283 = ssub.s32 %s39, %s46
      %s284 = sor.u32 %s282, %s283
      %p285 = scmp.eq.s32.totalorder %s284, 0
      %s287 = sadd.s32 %s286, 1
      %s288 = scalar_select %p285, %s286, %s287
      %p291 = pneg %p285
      %p292 = scmp.eq.s32.totalorder %s31, 1
      %p293 = por %p291, %p292
      %p294 = scmp.ne.s32.totalorder %s286, %s289
      %p295 = scmp.eq.s32.totalorder %s31, 0
      %p296 = por %p294, %p295
      %p297 = scmp.ne.s32.totalorder %s286, %s289
      %p298 = scmp.eq.s32.totalorder %s36, 1
      %p299 = por %p297, %p298
      %p300 = scmp.ne.s32.totalorder %s289, %s290
      %p301 = scmp.eq.s32.totalorder %s36, 0
      %p302 = por %p300, %p301
      %p303 = scmp.ne.s32.totalorder %s289, %s290
      %p304 = scmp.eq.s32.totalorder %s37, 1
      %p305 = por %p303, %p304
      %p307 = scmp.ne.s32.totalorder %s290, %s306
      %p308 = scmp.eq.s32.totalorder %s37, 0
      %p309 = por %p307, %p308
      %p310 = scmp.le.s32.totalorder 1, %s31
      %p311 = scmp.lt.s32.totalorder %s31, 3
      %p312 = pnand %p310, %p311
      %p313 = pneg %p312
      // Predicated region
      $region9: #{tpu_custom_call.1} parent=5 // pred_check
        _
      $region10: #{tpu_custom_call.1} parent=5 // pred_check_branch
        %315 = sbr.rel (%p312) target = $region12
      $region11: #{tpu_custom_call.1} parent=5 // pred_region
        %s316 = ssub.s32 %s31, 1
        // Predicated region
        $region13: #{tpu_custom_call.1} parent=11 // pred_check
          %p317 = pneg %p120
        $region14: #{tpu_custom_call.1} parent=11 // pred_check_branch
          %319 = sbr.rel (%p317) target = $region16
        $region15: #{tpu_custom_call.1} parent=11 // pred_region
          %s321 = ssub.s32 4096, 4096
          %322 = vsyncadd [#allocation6], %s321
          %s323 = sshll.u32 [#allocation7], 4
          %s324 = int_to_ptr.vmem [resolvable:$true] %s323
          %329 = dma.hbm_to_vmem [thread:$0]  %s2, 4096, %s324, [#allocation6], 256, 256, 16
        $region16: #{tpu_custom_call.1} parent=11 // pred_fallthru
          _
        // Predicated region
        $region17: #{tpu_custom_call.1} parent=11 // pred_check
          %p330 = pneg %p141
        $region18: #{tpu_custom_call.1} parent=11 // pred_check_branch
          %332 = sbr.rel (%p330) target = $region20
        $region19: #{tpu_custom_call.1} parent=11 // pred_region
          %s334 = ssub.s32 4096, 4096
          %335 = vsyncadd [#allocation9], %s334
          %s336 = sshll.u32 [#allocation8], 4
          %s337 = int_to_ptr.vmem [resolvable:$true] %s336
          %342 = dma.hbm_to_vmem [thread:$0]  %s3, 4096, %s337, [#allocation9], 256, 256, 16
        $region20: #{tpu_custom_call.1} parent=11 // pred_fallthru
          _
        // Predicated region
        $region21: #{tpu_custom_call.1} parent=11 // pred_check
          %p343 = pneg %p162
        $region22: #{tpu_custom_call.1} parent=11 // pred_check_branch
          %345 = sbr.rel (%p343) target = $region24
        $region23: #{tpu_custom_call.1} parent=11 // pred_region
          _
        $region24: #{tpu_custom_call.1} parent=11 // pred_fallthru
          _
        // Predicated region
        $region25: #{tpu_custom_call.1} parent=11 // pred_check
          %p346 = pneg %p183
        $region26: #{tpu_custom_call.1} parent=11 // pred_check_branch
          %348 = sbr.rel (%p346) target = $region28
        $region27: #{tpu_custom_call.1} parent=11 // pred_region
          %s350 = ssub.s32 2048, 2048
          %351 = vsyncadd [#allocation9], %s350
          %s352 = sshll.u32 [#allocation10], 4
          %s353 = int_to_ptr.vmem [resolvable:$true] %s352
          %358 = dma.hbm_to_vmem [thread:$0]  %s5, 2048, %s353, [#allocation9], 128, 128, 8
        $region28: #{tpu_custom_call.1} parent=11 // pred_fallthru
          _
        // Predicated region
        $region29: #{tpu_custom_call.1} parent=11 // pred_check
          %p359 = pneg %p204
        $region30: #{tpu_custom_call.1} parent=11 // pred_check_branch
          %361 = sbr.rel (%p359) target = $region32
        $region31: #{tpu_custom_call.1} parent=11 // pred_region
          _
        $region32: #{tpu_custom_call.1} parent=11 // pred_fallthru
          _
        // Predicated region
        $region33: #{tpu_custom_call.1} parent=11 // pred_check
          %p362 = pneg %p225
        $region34: #{tpu_custom_call.1} parent=11 // pred_check_branch
          %364 = sbr.rel (%p362) target = $region36
        $region35: #{tpu_custom_call.1} parent=11 // pred_region
          %s366 = ssub.s32 2048, 2048
          %367 = vsyncadd [#allocation12], %s366
          %s368 = sshll.u32 [#allocation11], 4
          %s369 = int_to_ptr.vmem [resolvable:$true] %s368
          %374 = dma.hbm_to_vmem [thread:$0]  %s7, 2048, %s369, [#allocation12], 128, 128, 8
        $region36: #{tpu_custom_call.1} parent=11 // pred_fallthru
          _
        // Predicated region
        $region37: #{tpu_custom_call.1} parent=11 // pred_check
          %p375 = pneg %p246
        $region38: #{tpu_custom_call.1} parent=11 // pred_check_branch
          %377 = sbr.rel (%p375) target = $region40
        $region39: #{tpu_custom_call.1} parent=11 // pred_region
          _
        $region40: #{tpu_custom_call.1} parent=11 // pred_fallthru
          _
      $region12: #{tpu_custom_call.1} parent=5 // pred_fallthru
        _
      %p378 = scmp.lt.s32.totalorder %s31, 2
      // Predicated region
      $region41: #{tpu_custom_call.1} parent=5 // pred_check
        %p379 = pneg %p378
      $region42: #{tpu_custom_call.1} parent=5 // pred_check_branch
        %381 = sbr.rel (%p379) target = $region44
      $region43: #{tpu_custom_call.1} parent=5 // pred_region
        // Predicated region
        $region45: #{tpu_custom_call.1} parent=43 // pred_check
          %p382 = pneg %p65
        $region46: #{tpu_custom_call.1} parent=43 // pred_check_branch
          %384 = sbr.rel (%p382) target = $region48
        $region47: #{tpu_custom_call.1} parent=43 // pred_region
          %s385 = sand.u32 %s55, 1
          %s386 = scalar_lea.sflag [#allocation3], %s385
          %s387 = sand.u32 %s55, 1
          %s388 = smul.addr %s387, 16
          %s389 = scalar_lea.vmem [#allocation2], %s388
          %s390 = smul.u32 2, %s39
          %s392 = ssub.s32 256, 256
          %393 = vsyncadd %s386, %s392
          %s394 = smul.addr %s38, 2
          %s395 = sadd.s32 %s390, %s394
          %s396 = smul.addr %s395, 128
          %s397 = scalar_lea.hbm %s0, %s396
          %s398 = sshll.u32 %s389, 4
          %s399 = int_to_ptr.vmem [resolvable:$true] %s398
          %404 = dma.hbm_to_vmem [thread:$0]  %s397, 256, %s399, %s386, 128, 128, 8
        $region48: #{tpu_custom_call.1} parent=43 // pred_fallthru
          _
        // Predicated region
        $region49: #{tpu_custom_call.1} parent=43 // pred_check
          %p405 = pneg %p93
        $region50: #{tpu_custom_call.1} parent=43 // pred_check_branch
          %407 = sbr.rel (%p405) target = $region52
        $region51: #{tpu_custom_call.1} parent=43 // pred_region
          %s408 = sand.u32 %s31, 1
          %s409 = scalar_lea.sflag [#allocation6], %s408
          %s410 = sand.u32 %s83, 1
          %s411 = smul.addr %s410, 2
          %s412 = scalar_lea.vmem [#allocation5], %s411
          %s414 = ssub.s32 32, 32
          %415 = vsyncadd %s409, %s414
          %s416 = sadd.s32 %s39, %s38
          %s417 = smul.addr %s416, 32
          %s418 = scalar_lea.hbm %s1, %s417
          %s420 = sshll.u32 %s412, 4
          %s421 = int_to_ptr.vmem [resolvable:$true] %s420
          %423 = dma.hbm_to_vmem [thread:$0]  %s418, 32, %s421, %s409
        $region52: #{tpu_custom_call.1} parent=43 // pred_fallthru
          _
      $region44: #{tpu_custom_call.1} parent=5 // pred_fallthru
        _
      %p424 = scmp.le.s32.totalorder 1, %s31
      %p425 = scmp.lt.s32.totalorder %s31, 3
      %p426 = pnand %p424, %p425
      %p427 = pneg %p426
      // Predicated region
      $region53: #{tpu_custom_call.1} parent=5 // pred_check
        _
      $region54: #{tpu_custom_call.1} parent=5 // pred_check_branch
        %429 = sbr.rel (%p426) target = $region56
      $region55: #{tpu_custom_call.1} parent=5 // pred_region
        %s430 = ssub.s32 %s31, 1
        %s431 = sand.u32 %s58, 1
        %s432 = scalar_lea.sflag [#allocation3], %s431
        %s433 = sand.u32 %s58, 1
        %s434 = smul.addr %s433, 16
        %s435 = scalar_lea.vmem [#allocation2], %s434
        // Predicated region
        $region57: #{tpu_custom_call.1} parent=55 // pred_check
          %p436 = pneg %p71
        $region58: #{tpu_custom_call.1} parent=55 // pred_check_branch
          %438 = sbr.rel (%p436) target = $region60
        $region59: #{tpu_custom_call.1} parent=55 // pred_region
          %439 = dma.done %s432, 256
        $region60: #{tpu_custom_call.1} parent=55 // pred_fallthru
          _
        %s440 = sand.u32 %s36, 1
        %s441 = scalar_lea.sflag [#allocation6], %s440
        %s442 = sand.u32 %s86, 1
        %s443 = smul.addr %s442, 2
        %s444 = scalar_lea.vmem [#allocation5], %s443
        // Predicated region
        $region61: #{tpu_custom_call.1} parent=55 // pred_check
          %p445 = pneg %p99
        $region62: #{tpu_custom_call.1} parent=55 // pred_check_branch
          %447 = sbr.rel (%p445) target = $region64
        $region63: #{tpu_custom_call.1} parent=55 // pred_region
          %448 = dma.done %s441, 32
        $region64: #{tpu_custom_call.1} parent=55 // pred_fallthru
          _
        // Predicated region
        $region65: #{tpu_custom_call.1} parent=55 // pred_check
          %p449 = pneg %p120
        $region66: #{tpu_custom_call.1} parent=55 // pred_check_branch
          %451 = sbr.rel (%p449) target = $region68
        $region67: #{tpu_custom_call.1} parent=55 // pred_region
          %452 = dma.done [#allocation6], 4096
        $region68: #{tpu_custom_call.1} parent=55 // pred_fallthru
          _
        // Predicated region
        $region69: #{tpu_custom_call.1} parent=55 // pred_check
          %p453 = pneg %p141
        $region70: #{tpu_custom_call.1} parent=55 // pred_check_branch
          %455 = sbr.rel (%p453) target = $region72
        $region71: #{tpu_custom_call.1} parent=55 // pred_region
          %456 = dma.done [#allocation9], 4096
        $region72: #{tpu_custom_call.1} parent=55 // pred_fallthru
          _
        // Predicated region
        $region73: #{tpu_custom_call.1} parent=55 // pred_check
          %p457 = pneg %p183
        $region74: #{tpu_custom_call.1} parent=55 // pred_check_branch
          %459 = sbr.rel (%p457) target = $region76
        $region75: #{tpu_custom_call.1} parent=55 // pred_region
          %460 = dma.done [#allocation9], 2048
        $region76: #{tpu_custom_call.1} parent=55 // pred_fallthru
          _
        // Predicated region
        $region77: #{tpu_custom_call.1} parent=55 // pred_check
          %p461 = pneg %p225
        $region78: #{tpu_custom_call.1} parent=55 // pred_check_branch
          %463 = sbr.rel (%p461) target = $region80
        $region79: #{tpu_custom_call.1} parent=55 // pred_region
          %464 = dma.done [#allocation12], 2048
        $region80: #{tpu_custom_call.1} parent=55 // pred_fallthru
          _
        %s465 = sand.u32 %s58, 1
        %s466 = scalar_lea.sflag [#allocation3], %s465
        %s467 = sand.u32 %s58, 1
        %s468 = smul.addr %s467, 16
        %s469 = scalar_lea.vmem [#allocation2], %s468
        %p470 = pneg %p71
        %p471 = pneg %p68
        %s472 = sand.u32 %s36, 1
        %s473 = scalar_lea.sflag [#allocation6], %s472
        %s474 = sand.u32 %s86, 1
        %s475 = smul.addr %s474, 2
        %s476 = scalar_lea.vmem [#allocation5], %s475
        %p477 = pneg %p99
        %p478 = pneg %p96
        %p479 = pneg %p120
        %p480 = pneg %p117
        %p481 = pneg %p141
        %p482 = pneg %p138
        %p483 = pneg %p162
        %p484 = pneg %p159
        %p485 = pneg %p183
        %p486 = pneg %p180
        %p487 = pneg %p204
        %p488 = pneg %p201
        %p489 = pneg %p225
        %p490 = pneg %p222
        %p491 = pneg %p246
        %p492 = pneg %p243
        %p493 = pneg %p274
        %p494 = pneg %p271
        %s495 = sand.u32 %s261, 1
        %s496 = scalar_lea.sflag [#allocation4], %s495
        %s497 = sand.u32 %s261, 1
        %s498 = smul.addr %s497, 16
        %s499 = scalar_lea.vmem [#allocation13], %s498
        %p500 = pneg %p302
        %p501 = pneg %p299
        %s502 = sand.u32 %s289, 1
        %s503 = scalar_lea.sflag [#allocation15], %s502
        %s504 = sand.u32 %s289, 1
        %s505 = smul.addr %s504, 16
        %s506 = scalar_lea.vmem [#allocation14], %s505
        %s507 = smul.u32 2, %s41
        %s508 = smul.u32 2, %s41
        %s509 = smul.u32 2, %s41
        %v510 = vld [vmem:[%s435] sm:$0xff]
        %v511 = vld [vmem:[%s435 + $0x8] sm:$0xff]
        %v512 = vld [vmem:[%s444] sm:$0x3]
        %vm515 = vcmask 1041408
        %v516 = vrot.slane %v510, 6
        %v517 = vrot.slane %v511, 6
        %v518 = vsel %vm515, %v516, %v517
        %v521 = vsel %vm515, %v512, %v516
        %v522 = vld [vmem:[#allocation7] sm:$0xff]
        %v523 = vld [vmem:[#allocation7 + $0x8] sm:$0xff]
        %v524 = vld [vmem:[#allocation7 + $0x10] sm:$0xff]
        %v525 = vld [vmem:[#allocation7 + $0x18] sm:$0xff]
        %v526 = vld [vmem:[#allocation7 + $0x20] sm:$0xff]
        %v527 = vld [vmem:[#allocation7 + $0x28] sm:$0xff]
        %v528 = vld [vmem:[#allocation7 + $0x30] sm:$0xff]
        %v529 = vld [vmem:[#allocation7 + $0x38] sm:$0xff]
        %v530 = vld [vmem:[#allocation7 + $0x40] sm:$0xff]
        %v531 = vld [vmem:[#allocation7 + $0x48] sm:$0xff]
        %v532 = vld [vmem:[#allocation7 + $0x50] sm:$0xff]
        %v533 = vld [vmem:[#allocation7 + $0x58] sm:$0xff]
        %v534 = vld [vmem:[#allocation7 + $0x60] sm:$0xff]
        %v535 = vld [vmem:[#allocation7 + $0x68] sm:$0xff]
        %v536 = vld [vmem:[#allocation7 + $0x70] sm:$0xff]
        %v537 = vld [vmem:[#allocation7 + $0x78] sm:$0xff]
        %v538 = vld [vmem:[#allocation7 + $0x80] sm:$0xff]
        %v539 = vld [vmem:[#allocation7 + $0x88] sm:$0xff]
        %v540 = vld [vmem:[#allocation7 + $0x90] sm:$0xff]
        %v541 = vld [vmem:[#allocation7 + $0x98] sm:$0xff]
        %v542 = vld [vmem:[#allocation7 + $0xa0] sm:$0xff]
        %v543 = vld [vmem:[#allocation7 + $0xa8] sm:$0xff]
        %v544 = vld [vmem:[#allocation7 + $0xb0] sm:$0xff]
        %v545 = vld [vmem:[#allocation7 + $0xb8] sm:$0xff]
        %v546 = vld [vmem:[#allocation7 + $0xc0] sm:$0xff]
        %v547 = vld [vmem:[#allocation7 + $0xc8] sm:$0xff]
        %v548 = vld [vmem:[#allocation7 + $0xd0] sm:$0xff]
        %v549 = vld [vmem:[#allocation7 + $0xd8] sm:$0xff]
        %v550 = vld [vmem:[#allocation7 + $0xe0] sm:$0xff]
        %v551 = vld [vmem:[#allocation7 + $0xe8] sm:$0xff]
        %v552 = vld [vmem:[#allocation7 + $0xf0] sm:$0xff]
        %v553 = vld [vmem:[#allocation7 + $0xf8] sm:$0xff]
        %v554 = vld [vmem:[#allocation8] sm:$0xff]
        %v555 = vld [vmem:[#allocation8 + $0x8] sm:$0xff]
        %v556 = vld [vmem:[#allocation8 + $0x10] sm:$0xff]
        %v557 = vld [vmem:[#allocation8 + $0x18] sm:$0xff]
        %v558 = vld [vmem:[#allocation8 + $0x20] sm:$0xff]
        %v559 = vld [vmem:[#allocation8 + $0x28] sm:$0xff]
        %v560 = vld [vmem:[#allocation8 + $0x30] sm:$0xff]
        %v561 = vld [vmem:[#allocation8 + $0x38] sm:$0xff]
        %v562 = vld [vmem:[#allocation8 + $0x40] sm:$0xff]
        %v563 = vld [vmem:[#allocation8 + $0x48] sm:$0xff]
        %v564 = vld [vmem:[#allocation8 + $0x50] sm:$0xff]
        %v565 = vld [vmem:[#allocation8 + $0x58] sm:$0xff]
        %v566 = vld [vmem:[#allocation8 + $0x60] sm:$0xff]
        %v567 = vld [vmem:[#allocation8 + $0x68] sm:$0xff]
        %v568 = vld [vmem:[#allocation8 + $0x70] sm:$0xff]
        %v569 = vld [vmem:[#allocation8 + $0x78] sm:$0xff]
        %v570 = vld [vmem:[#allocation8 + $0x80] sm:$0xff]
        %v571 = vld [vmem:[#allocation8 + $0x88] sm:$0xff]
        %v572 = vld [vmem:[#allocation8 + $0x90] sm:$0xff]
        %v573 = vld [vmem:[#allocation8 + $0x98] sm:$0xff]
        %v574 = vld [vmem:[#allocation8 + $0xa0] sm:$0xff]
        %v575 = vld [vmem:[#allocation8 + $0xa8] sm:$0xff]
        %v576 = vld [vmem:[#allocation8 + $0xb0] sm:$0xff]
        %v577 = vld [vmem:[#allocation8 + $0xb8] sm:$0xff]
        %v578 = vld [vmem:[#allocation8 + $0xc0] sm:$0xff]
        %v579 = vld [vmem:[#allocation8 + $0xc8] sm:$0xff]
        %v580 = vld [vmem:[#allocation8 + $0xd0] sm:$0xff]
        %v581 = vld [vmem:[#allocation8 + $0xd8] sm:$0xff]
        %v582 = vld [vmem:[#allocation8 + $0xe0] sm:$0xff]
        %v583 = vld [vmem:[#allocation8 + $0xe8] sm:$0xff]
        %v584 = vld [vmem:[#allocation8 + $0xf0] sm:$0xff]
        %v585 = vld [vmem:[#allocation8 + $0xf8] sm:$0xff]
        %586 = vmatprep.subr.mxu0 %v585
        %587 = vmatpush1.msra.mxu0 %v584
        %588 = vmatprep.subr.mxu0 %v583
        %589 = vmatpush1.msra.mxu0 %v582
        %590 = vmatprep.subr.mxu0 %v581
        %591 = vmatpush1.msra.mxu0 %v580
        %592 = vmatprep.subr.mxu0 %v579
        %593 = vmatpush1.msra.mxu0 %v578
        %594 = vmatprep.subr.mxu0 %v577
        %595 = vmatpush1.msra.mxu0 %v576
        %596 = vmatprep.subr.mxu0 %v575
        %597 = vmatpush1.msra.mxu0 %v574
        %598 = vmatprep.subr.mxu0 %v573
        %599 = vmatpush1.msra.mxu0 %v572
        %600 = vmatprep.subr.mxu0 %v571
        %601 = vmatpush1.msra.mxu0 %v570
        %602 = vmatprep.subr.mxu0 %v569
        %603 = vmatpush1.msra.mxu0 %v568
        %604 = vmatprep.subr.mxu0 %v567
        %605 = vmatpush1.msra.mxu0 %v566
        %606 = vmatprep.subr.mxu0 %v565
        %607 = vmatpush1.msra.mxu0 %v564
        %608 = vmatprep.subr.mxu0 %v563
        %609 = vmatpush1.msra.mxu0 %v562
        %610 = vmatprep.subr.mxu0 %v561
        %611 = vmatpush1.msra.mxu0 %v560
        %612 = vmatprep.subr.mxu0 %v559
        %613 = vmatpush1.msra.mxu0 %v558
        %614 = vmatprep.subr.mxu0 %v557
        %615 = vmatpush1.msra.mxu0 %v556
        %616 = vmatprep.subr.mxu0 %v555
        %617 = vmatpush1.msra.mxu0 %v554
        %618 = vmatprep.subr.mxu0 0.0
        %619 = vmatpush2.msra.mxu0 0.0
        %620 = vmatprep.subr.mxu0 0.0
        %621 = vmatpush2.msra.mxu0 0.0
        %622 = vmatprep.subr.mxu0 0.0
        %623 = vmatpush2.msra.mxu0 0.0
        %624 = vmatprep.subr.mxu0 0.0
        %625 = vmatpush2.msra.mxu0 0.0
        %626 = vmatprep.subr.mxu0 0.0
        %627 = vmatpush2.msra.mxu0 0.0
        %628 = vmatprep.subr.mxu0 0.0
        %629 = vmatpush2.msra.mxu0 0.0
        %630 = vmatprep.subr.mxu0 0.0
        %631 = vmatpush2.msra.mxu0 0.0
        %632 = vmatprep.subr.mxu0 0.0
        %633 = vmatpush2.msra.mxu0 0.0
        %634 = vmatprep.subr.mxu0 0.0
        %635 = vmatpush2.msra.mxu0 0.0
        %636 = vmatprep.subr.mxu0 0.0
        %637 = vmatpush2.msra.mxu0 0.0
        %638 = vmatprep.subr.mxu0 0.0
        %639 = vmatpush2.msra.mxu0 0.0
        %640 = vmatprep.subr.mxu0 0.0
        %641 = vmatpush2.msra.mxu0 0.0
        %642 = vmatprep.subr.mxu0 0.0
        %643 = vmatpush2.msra.mxu0 0.0
        %644 = vmatprep.subr.mxu0 0.0
        %645 = vmatpush2.msra.mxu0 0.0
        %646 = vmatprep.subr.mxu0 0.0
        %647 = vmatpush2.msra.mxu0 0.0
        %648 = vmatprep.subr.mxu0 0.0
        %649 = vmatpush2.msra.mxu0 0.0
        %650 = vmatprep.mubr.f32.mxu0 0.0
        %651 = vmatmul.mubr.f32.gmra.mxu0 %v521
        %v652 = vpop.f32.mrf.mxu0
        %v653 = vadd.f32 0.0, %v652
        %v654 = vpop.f32.mrf.mxu0
        %v655 = vadd.f32 0.0, %v654
        %656 = vmatprep.mubr.f32.mxu0 0.0
        %657 = vmatmul.mubr.f32.gmra.mxu0 %v518
        %v658 = vpop.f32.mrf.mxu0
        %v659 = vadd.f32 0.0, %v658
        %v660 = vpop.f32.mrf.mxu0
        %v661 = vadd.f32 0.0, %v660
        %662 = vdwg.mxu0
        %663 = vmatprep.subr.mxu0 %v553
        %664 = vmatpush1.msra.mxu0 %v552
        %665 = vmatprep.subr.mxu0 %v551
        %666 = vmatpush1.msra.mxu0 %v550
        %667 = vmatprep.subr.mxu0 %v549
        %668 = vmatpush1.msra.mxu0 %v548
        %669 = vmatprep.subr.mxu0 %v547
        %670 = vmatpush1.msra.mxu0 %v546
        %671 = vmatprep.subr.mxu0 %v545
        %672 = vmatpush1.msra.mxu0 %v544
        %673 = vmatprep.subr.mxu0 %v543
        %674 = vmatpush1.msra.mxu0 %v542
        %675 = vmatprep.subr.mxu0 %v541
        %676 = vmatpush1.msra.mxu0 %v540
        %677 = vmatprep.subr.mxu0 %v539
        %678 = vmatpush1.msra.mxu0 %v538
        %679 = vmatprep.subr.mxu0 %v537
        %680 = vmatpush1.msra.mxu0 %v536
        %681 = vmatprep.subr.mxu0 %v535
        %682 = vmatpush1.msra.mxu0 %v534
        %683 = vmatprep.subr.mxu0 %v533
        %684 = vmatpush1.msra.mxu0 %v532
        %685 = vmatprep.subr.mxu0 %v531
        %686 = vmatpush1.msra.mxu0 %v530
        %687 = vmatprep.subr.mxu0 %v529
        %688 = vmatpush1.msra.mxu0 %v528
        %689 = vmatprep.subr.mxu0 %v527
        %690 = vmatpush1.msra.mxu0 %v526
        %691 = vmatprep.subr.mxu0 %v525
        %692 = vmatpush1.msra.mxu0 %v524
        %693 = vmatprep.subr.mxu0 %v523
        %694 = vmatpush1.msra.mxu0 %v522
        %695 = vmatprep.subr.mxu0 0.0
        %696 = vmatpush2.msra.mxu0 0.0
        %697 = vmatprep.subr.mxu0 0.0
        %698 = vmatpush2.msra.mxu0 0.0
        %699 = vmatprep.subr.mxu0 0.0
        %700 = vmatpush2.msra.mxu0 0.0
        %701 = vmatprep.subr.mxu0 0.0
        %702 = vmatpush2.msra.mxu0 0.0
        %703 = vmatprep.subr.mxu0 0.0
        %704 = vmatpush2.msra.mxu0 0.0
        %705 = vmatprep.subr.mxu0 0.0
        %706 = vmatpush2.msra.mxu0 0.0
        %707 = vmatprep.subr.mxu0 0.0
        %708 = vmatpush2.msra.mxu0 0.0
        %709 = vmatprep.subr.mxu0 0.0
        %710 = vmatpush2.msra.mxu0 0.0
        %711 = vmatprep.subr.mxu0 0.0
        %712 = vmatpush2.msra.mxu0 0.0
        %713 = vmatprep.subr.mxu0 0.0
        %714 = vmatpush2.msra.mxu0 0.0
        %715 = vmatprep.subr.mxu0 0.0
        %716 = vmatpush2.msra.mxu0 0.0
        %717 = vmatprep.subr.mxu0 0.0
        %718 = vmatpush2.msra.mxu0 0.0
        %719 = vmatprep.subr.mxu0 0.0
        %720 = vmatpush2.msra.mxu0 0.0
        %721 = vmatprep.subr.mxu0 0.0
        %722 = vmatpush2.msra.mxu0 0.0
        %723 = vmatprep.subr.mxu0 0.0
        %724 = vmatpush2.msra.mxu0 0.0
        %725 = vmatprep.subr.mxu0 0.0
        %726 = vmatpush2.msra.mxu0 0.0
        %727 = vmatprep.mubr.f32.mxu0 0.0
        %728 = vmatmul.mubr.f32.gmra.mxu0 %v510
        %v729 = vpop.f32.mrf.mxu0
        %v730 = vadd.f32 %v653, %v729
        %v731 = vpop.f32.mrf.mxu0
        %v732 = vadd.f32 %v655, %v731
        %733 = vmatprep.mubr.f32.mxu0 0.0
        %734 = vmatmul.mubr.f32.gmra.mxu0 %v511
        %v735 = vpop.f32.mrf.mxu0
        %v736 = vadd.f32 %v659, %v735
        %v737 = vpop.f32.mrf.mxu0
        %v738 = vadd.f32 %v661, %v737
        %739 = vdwg.mxu0
        %v740 = vld [vmem:[%s4] sm:$0x3]
        %v742 = vlaneseq
        %v743 = vshrl.u32 %v742, 7
        %v744 = vsub.s32 0, %v743
        %v745 = vrot.slane %v740, %v744
        %v746 = vlaneseq
        %v747 = vshrl.u32 %v746, 7
        %v748 = vsub.s32 1, %v747
        %v749 = vrot.slane %v740, %v748
        %v752 = vadd.f32 %v730, %v745
        %v753 = vadd.f32 %v732, %v749
        %v754 = vadd.f32 %v736, %v745
        %v755 = vadd.f32 %v738, %v749
        %v756 = vtanh.pop %v752
        %v757 = vtanh.pop %v754
        %v758 = vxor.u32 %v753, 2147483648
        %v759 = vxor.u32 %v755, 2147483648
        %v760 = vmul.f32 %v758, 1.442695
        %v761 = vpow.pop %v760
        %v762 = vmul.f32 %v759, 1.442695
        %v763 = vpow.pop %v762
        %v764 = vadd.f32 %v761, 1.0
        %v765 = vadd.f32 %v763, 1.0
        %v766 = vrcp.pop %v764
        %v767 = vmul.f32 1.0, %v766
        %v768 = vrcp.pop %v765
        %v769 = vmul.f32 1.0, %v768
        %v770 = vmul.f32 %v756, %v767
        %v771 = vmul.f32 %v757, %v769
        %v772 = vld [vmem:[#allocation11] sm:$0xff]
        %v773 = vld [vmem:[#allocation11 + $0x8] sm:$0xff]
        %v774 = vld [vmem:[#allocation11 + $0x10] sm:$0xff]
        %v775 = vld [vmem:[#allocation11 + $0x18] sm:$0xff]
        %v776 = vld [vmem:[#allocation11 + $0x20] sm:$0xff]
        %v777 = vld [vmem:[#allocation11 + $0x28] sm:$0xff]
        %v778 = vld [vmem:[#allocation11 + $0x30] sm:$0xff]
        %v779 = vld [vmem:[#allocation11 + $0x38] sm:$0xff]
        %v780 = vld [vmem:[#allocation11 + $0x40] sm:$0xff]
        %v781 = vld [vmem:[#allocation11 + $0x48] sm:$0xff]
        %v782 = vld [vmem:[#allocation11 + $0x50] sm:$0xff]
        %v783 = vld [vmem:[#allocation11 + $0x58] sm:$0xff]
        %v784 = vld [vmem:[#allocation11 + $0x60] sm:$0xff]
        %v785 = vld [vmem:[#allocation11 + $0x68] sm:$0xff]
        %v786 = vld [vmem:[#allocation11 + $0x70] sm:$0xff]
        %v787 = vld [vmem:[#allocation11 + $0x78] sm:$0xff]
        %v788 = vld [vmem:[%s8] sm:$0x1]
        %v790 = vlaneseq
        %v791 = vshrl.u32 %v790, 7
        %v792 = vsub.s32 0, %v791
        %v793 = vrot.slane %v788, %v792
        %795 = vmatprep.subr.mxu0 0.0
        %796 = vmatpush1.msra.mxu0 %v787
        %797 = vmatprep.subr.mxu0 0.0
        %798 = vmatpush1.msra.mxu0 %v786
        %799 = vmatprep.subr.mxu0 0.0
        %800 = vmatpush1.msra.mxu0 %v785
        %801 = vmatprep.subr.mxu0 0.0
        %802 = vmatpush1.msra.mxu0 %v784
        %803 = vmatprep.subr.mxu0 0.0
        %804 = vmatpush1.msra.mxu0 %v783
        %805 = vmatprep.subr.mxu0 0.0
        %806 = vmatpush1.msra.mxu0 %v782
        %807 = vmatprep.subr.mxu0 0.0
        %808 = vmatpush1.msra.mxu0 %v781
        %809 = vmatprep.subr.mxu0 0.0
        %810 = vmatpush1.msra.mxu0 %v780
        %811 = vmatprep.subr.mxu0 0.0
        %812 = vmatpush1.msra.mxu0 %v779
        %813 = vmatprep.subr.mxu0 0.0
        %814 = vmatpush1.msra.mxu0 %v778
        %815 = vmatprep.subr.mxu0 0.0
        %816 = vmatpush1.msra.mxu0 %v777
        %817 = vmatprep.subr.mxu0 0.0
        %818 = vmatpush1.msra.mxu0 %v776
        %819 = vmatprep.subr.mxu0 0.0
        %820 = vmatpush1.msra.mxu0 %v775
        %821 = vmatprep.subr.mxu0 0.0
        %822 = vmatpush1.msra.mxu0 %v774
        %823 = vmatprep.subr.mxu0 0.0
        %824 = vmatpush1.msra.mxu0 %v773
        %825 = vmatprep.subr.mxu0 0.0
        %826 = vmatpush1.msra.mxu0 %v772
        %827 = vmatprep.subr.mxu0 0.0
        %828 = vmatpush2.msra.mxu0 0.0
        %829 = vmatprep.subr.mxu0 0.0
        %830 = vmatpush2.msra.mxu0 0.0
        %831 = vmatprep.subr.mxu0 0.0
        %832 = vmatpush2.msra.mxu0 0.0
        %833 = vmatprep.subr.mxu0 0.0
        %834 = vmatpush2.msra.mxu0 0.0
        %835 = vmatprep.subr.mxu0 0.0
        %836 = vmatpush2.msra.mxu0 0.0
        %837 = vmatprep.subr.mxu0 0.0
        %838 = vmatpush2.msra.mxu0 0.0
        %839 = vmatprep.subr.mxu0 0.0
        %840 = vmatpush2.msra.mxu0 0.0
        %841 = vmatprep.subr.mxu0 0.0
        %842 = vmatpush2.msra.mxu0 0.0
        %843 = vmatprep.subr.mxu0 0.0
        %844 = vmatpush2.msra.mxu0 0.0
        %845 = vmatprep.subr.mxu0 0.0
        %846 = vmatpush2.msra.mxu0 0.0
        %847 = vmatprep.subr.mxu0 0.0
        %848 = vmatpush2.msra.mxu0 0.0
        %849 = vmatprep.subr.mxu0 0.0
        %850 = vmatpush2.msra.mxu0 0.0
        %851 = vmatprep.subr.mxu0 0.0
        %852 = vmatpush2.msra.mxu0 0.0
        %853 = vmatprep.subr.mxu0 0.0
        %854 = vmatpush2.msra.mxu0 0.0
        %855 = vmatprep.subr.mxu0 0.0
        %856 = vmatpush2.msra.mxu0 0.0
        %857 = vmatprep.subr.mxu0 0.0
        %858 = vmatpush2.msra.mxu0 0.0
        %859 = vmatprep.mubr.f32.mxu0 0.0
        %860 = vmatmul.mubr.f32.gmra.mxu0 %v770
        %v861 = vpop.f32.mrf.mxu0
        %v862 = vadd.f32 %v793, %v861
        %v863 = vpop.f32.mrf.mxu0
        %864 = vmatprep.mubr.f32.mxu0 0.0
        %865 = vmatmul.mubr.f32.gmra.mxu0 %v771
        %v866 = vpop.f32.mrf.mxu0
        %v867 = vadd.f32 %v793, %v866
        %v868 = vpop.f32.mrf.mxu0
        %869 = vdwg.mxu0
        %870 = vst [vmem:[%s506] sm:$0xff] %v862
        %871 = vst [vmem:[%s506 + $0x8] sm:$0xff] %v867
        %v872 = vld [vmem:[#allocation10] sm:$0xff]
        %v873 = vld [vmem:[#allocation10 + $0x8] sm:$0xff]
        %v874 = vld [vmem:[#allocation10 + $0x10] sm:$0xff]
        %v875 = vld [vmem:[#allocation10 + $0x18] sm:$0xff]
        %v876 = vld [vmem:[#allocation10 + $0x20] sm:$0xff]
        %v877 = vld [vmem:[#allocation10 + $0x28] sm:$0xff]
        %v878 = vld [vmem:[#allocation10 + $0x30] sm:$0xff]
        %v879 = vld [vmem:[#allocation10 + $0x38] sm:$0xff]
        %v880 = vld [vmem:[#allocation10 + $0x40] sm:$0xff]
        %v881 = vld [vmem:[#allocation10 + $0x48] sm:$0xff]
        %v882 = vld [vmem:[#allocation10 + $0x50] sm:$0xff]
        %v883 = vld [vmem:[#allocation10 + $0x58] sm:$0xff]
        %v884 = vld [vmem:[#allocation10 + $0x60] sm:$0xff]
        %v885 = vld [vmem:[#allocation10 + $0x68] sm:$0xff]
        %v886 = vld [vmem:[#allocation10 + $0x70] sm:$0xff]
        %v887 = vld [vmem:[#allocation10 + $0x78] sm:$0xff]
        %v888 = vld [vmem:[%s6] sm:$0x1]
        %v890 = vlaneseq
        %v891 = vshrl.u32 %v890, 7
        %v892 = vsub.s32 0, %v891
        %v893 = vrot.slane %v888, %v892
        %895 = vmatprep.subr.mxu0 0.0
        %896 = vmatpush1.msra.mxu0 %v887
        %897 = vmatprep.subr.mxu0 0.0
        %898 = vmatpush1.msra.mxu0 %v886
        %899 = vmatprep.subr.mxu0 0.0
        %900 = vmatpush1.msra.mxu0 %v885
        %901 = vmatprep.subr.mxu0 0.0
        %902 = vmatpush1.msra.mxu0 %v884
        %903 = vmatprep.subr.mxu0 0.0
        %904 = vmatpush1.msra.mxu0 %v883
        %905 = vmatprep.subr.mxu0 0.0
        %906 = vmatpush1.msra.mxu0 %v882
        %907 = vmatprep.subr.mxu0 0.0
        %908 = vmatpush1.msra.mxu0 %v881
        %909 = vmatprep.subr.mxu0 0.0
        %910 = vmatpush1.msra.mxu0 %v880
        %911 = vmatprep.subr.mxu0 0.0
        %912 = vmatpush1.msra.mxu0 %v879
        %913 = vmatprep.subr.mxu0 0.0
        %914 = vmatpush1.msra.mxu0 %v878
        %915 = vmatprep.subr.mxu0 0.0
        %916 = vmatpush1.msra.mxu0 %v877
        %917 = vmatprep.subr.mxu0 0.0
        %918 = vmatpush1.msra.mxu0 %v876
        %919 = vmatprep.subr.mxu0 0.0
        %920 = vmatpush1.msra.mxu0 %v875
        %921 = vmatprep.subr.mxu0 0.0
        %922 = vmatpush1.msra.mxu0 %v874
        %923 = vmatprep.subr.mxu0 0.0
        %924 = vmatpush1.msra.mxu0 %v873
        %925 = vmatprep.subr.mxu0 0.0
        %926 = vmatpush1.msra.mxu0 %v872
        %927 = vmatprep.subr.mxu0 0.0
        %928 = vmatpush2.msra.mxu0 0.0
        %929 = vmatprep.subr.mxu0 0.0
        %930 = vmatpush2.msra.mxu0 0.0
        %931 = vmatprep.subr.mxu0 0.0
        %932 = vmatpush2.msra.mxu0 0.0
        %933 = vmatprep.subr.mxu0 0.0
        %934 = vmatpush2.msra.mxu0 0.0
        %935 = vmatprep.subr.mxu0 0.0
        %936 = vmatpush2.msra.mxu0 0.0
        %937 = vmatprep.subr.mxu0 0.0
        %938 = vmatpush2.msra.mxu0 0.0
        %939 = vmatprep.subr.mxu0 0.0
        %940 = vmatpush2.msra.mxu0 0.0
        %941 = vmatprep.subr.mxu0 0.0
        %942 = vmatpush2.msra.mxu0 0.0
        %943 = vmatprep.subr.mxu0 0.0
        %944 = vmatpush2.msra.mxu0 0.0
        %945 = vmatprep.subr.mxu0 0.0
        %946 = vmatpush2.msra.mxu0 0.0
        %947 = vmatprep.subr.mxu0 0.0
        %948 = vmatpush2.msra.mxu0 0.0
        %949 = vmatprep.subr.mxu0 0.0
        %950 = vmatpush2.msra.mxu0 0.0
        %951 = vmatprep.subr.mxu0 0.0
        %952 = vmatpush2.msra.mxu0 0.0
        %953 = vmatprep.subr.mxu0 0.0
        %954 = vmatpush2.msra.mxu0 0.0
        %955 = vmatprep.subr.mxu0 0.0
        %956 = vmatpush2.msra.mxu0 0.0
        %957 = vmatprep.subr.mxu0 0.0
        %958 = vmatpush2.msra.mxu0 0.0
        %959 = vmatprep.mubr.f32.mxu0 0.0
        %960 = vmatmul.mubr.f32.gmra.mxu0 %v770
        %v961 = vpop.f32.mrf.mxu0
        %v962 = vadd.f32 %v893, %v961
        %v963 = vpop.f32.mrf.mxu0
        %964 = vmatprep.mubr.f32.mxu0 0.0
        %965 = vmatmul.mubr.f32.gmra.mxu0 %v771
        %v966 = vpop.f32.mrf.mxu0
        %v967 = vadd.f32 %v893, %v966
        %v968 = vpop.f32.mrf.mxu0
        %969 = vdwg.mxu0
        %v970 = vadd.f32 %v962, %v510
        %v971 = vadd.f32 %v967, %v511
        %972 = vst [vmem:[%s499] sm:$0xff] %v970
        %973 = vst [vmem:[%s499 + $0x8] sm:$0xff] %v971
        %s974 = sand.u32 %s261, 1
        %s975 = scalar_lea.sflag [#allocation4], %s974
        %s976 = sand.u32 %s261, 1
        %s977 = smul.addr %s976, 16
        %s978 = scalar_lea.vmem [#allocation13], %s977
        %s979 = sand.u32 %s289, 1
        %s980 = scalar_lea.sflag [#allocation15], %s979
        %s981 = sand.u32 %s289, 1
        %s982 = smul.addr %s981, 16
        %s983 = scalar_lea.vmem [#allocation14], %s982
        // Predicated region
        $region81: #{tpu_custom_call.1} parent=55 // pred_check
          %p984 = pneg %p271
        $region82: #{tpu_custom_call.1} parent=55 // pred_check_branch
          %986 = sbr.rel (%p984) target = $region84
        $region83: #{tpu_custom_call.1} parent=55 // pred_region
          %s987 = smul.u32 2, %s41
          %s989 = ssub.s32 256, 256
          %990 = vsyncadd %s975, %s989
          %s991 = smul.addr %s40, 2
          %s992 = sadd.s32 %s987, %s991
          %s993 = smul.addr %s992, 128
          %s994 = scalar_lea.hbm %s9, %s993
          %s995 = sshll.u32 %s978, 4
          %s996 = int_to_ptr.vmem [resolvable:$true] %s995
          %1001 = dma.vmem_to_hbm [thread:$0]  %s996, 256, %s994, %s975, 128, 128, 8
        $region84: #{tpu_custom_call.1} parent=55 // pred_fallthru
          _
        // Predicated region
        $region85: #{tpu_custom_call.1} parent=55 // pred_check
          %p1002 = pneg %p299
        $region86: #{tpu_custom_call.1} parent=55 // pred_check_branch
          %1004 = sbr.rel (%p1002) target = $region88
        $region87: #{tpu_custom_call.1} parent=55 // pred_region
          %s1005 = smul.u32 2, %s41
          %s1007 = ssub.s32 256, 256
          %1008 = vsyncadd %s980, %s1007
          %s1009 = smul.addr %s40, 2
          %s1010 = sadd.s32 %s1005, %s1009
          %s1011 = smul.addr %s1010, 128
          %s1012 = scalar_lea.hbm %s10, %s1011
          %s1013 = sshll.u32 %s983, 4
          %s1014 = int_to_ptr.vmem [resolvable:$true] %s1013
          %1019 = dma.vmem_to_hbm [thread:$0]  %s1014, 256, %s1012, %s980, 128, 128, 8
        $region88: #{tpu_custom_call.1} parent=55 // pred_fallthru
          _
      $region56: #{tpu_custom_call.1} parent=5 // pred_fallthru
        _
      %p1020 = scmp.le.s32.totalorder 2, %s31
      // Predicated region
      $region89: #{tpu_custom_call.1} parent=5 // pred_check
        %p1021 = pneg %p1020
      $region90: #{tpu_custom_call.1} parent=5 // pred_check_branch
        %1023 = sbr.rel (%p1021) target = $region92
      $region91: #{tpu_custom_call.1} parent=5 // pred_region
        %s1024 = ssub.s32 %s31, 2
        // Predicated region
        $region93: #{tpu_custom_call.1} parent=91 // pred_check
          %p1025 = pneg %p277
        $region94: #{tpu_custom_call.1} parent=91 // pred_check_branch
          %1027 = sbr.rel (%p1025) target = $region96
        $region95: #{tpu_custom_call.1} parent=91 // pred_region
          %s1028 = sand.u32 %s262, 1
          %s1029 = scalar_lea.sflag [#allocation4], %s1028
          %s1030 = sand.u32 %s262, 1
          %s1031 = smul.addr %s1030, 16
          %s1032 = scalar_lea.vmem [#allocation13], %s1031
          %1033 = dma.done %s1029, 256
        $region96: #{tpu_custom_call.1} parent=91 // pred_fallthru
          _
        // Predicated region
        $region97: #{tpu_custom_call.1} parent=91 // pred_check
          %p1034 = pneg %p305
        $region98: #{tpu_custom_call.1} parent=91 // pred_check_branch
          %1036 = sbr.rel (%p1034) target = $region100
        $region99: #{tpu_custom_call.1} parent=91 // pred_region
          %s1037 = sand.u32 %s290, 1
          %s1038 = scalar_lea.sflag [#allocation15], %s1037
          %s1039 = sand.u32 %s290, 1
          %s1040 = smul.addr %s1039, 16
          %s1041 = scalar_lea.vmem [#allocation14], %s1040
          %1042 = dma.done %s1038, 256
        $region100: #{tpu_custom_call.1} parent=91 // pred_fallthru
          _
      $region92: #{tpu_custom_call.1} parent=5 // pred_fallthru
        _
    $region6: #{tpu_custom_call.1} parent=1 // loop_footer
      %s35 = sadd.s32 1, %s31
    $region7: #{tpu_custom_call.1} parent=1 // loop_footer_branch
      %30 = sbr.rel target = $region3
    $region8: #{tpu_custom_call.1} parent=1 // loop_exit
      _
    %1043 = vsyncpa [#allocation3], 1
    %s1044 = scalar_lea.sflag [#allocation3], 1
    %1045 = vsyncpa %s1044, 1
    %1046 = vsyncpa [#allocation6], 1
    %s1047 = scalar_lea.sflag [#allocation6], 1
    %1048 = vsyncpa %s1047, 1
    %1049 = vsyncpa [#allocation9], 1
    %1050 = vsyncpa [#allocation12], 1
    %1051 = vsyncpa [#allocation4], 1
    %s1052 = scalar_lea.sflag [#allocation4], 1
    %1053 = vsyncpa %s1052, 1
    %1054 = vsyncpa [#allocation15], 1
    %s1055 = scalar_lea.sflag [#allocation15], 1
    %1056 = vsyncpa %s1055, 1

</llo_original>
